<compile_context>
chip_gen: v6e
topology: v6e:2x2x1
jax: 0.10.0
libtpu: 0.0.40
codegen_flags: <defaults>
</compile_context>

<pallas_src>
import jax
import jax.numpy as jnp
from jax.experimental import pallas as pl
from jax.experimental.pallas import tpu as pltpu

_NEG_BIG = -1e30  # additive mask that zeroes padded class columns in the softmax


def _head_kernel(x_ref, w_ref, p_ref, o_ref, acc_ref):
    # x_ref:   (TB, TK)  row-block of flattened input, feature slice k
    # w_ref:   (TK, Cp)  matching slice of the pre-transposed, class-padded weight
    # p_ref:   (8, Cp)   packed per-class params:
    #                    row0=bias, row1=bn_scale, row2=bn_shift, row3=softmax mask
    # o_ref:   (TB, Cp)  softmax output block (padded classes come out exactly 0)
    # acc_ref: (TB, Cp)  f32 accumulator scratch, persists across the K grid axis
    k = pl.program_id(1)

    @pl.when(k == 0)
    def _():
        acc_ref[...] = jnp.zeros_like(acc_ref)

    # Hot path: MXU matmul, f32 accumulation.
    acc_ref[...] += jnp.dot(x_ref[...], w_ref[...],
                            preferred_element_type=jnp.float32)

    @pl.when(k == pl.num_programs(1) - 1)
    def _():
        bias = p_ref[0:1, :]
        scale = p_ref[1:2, :]
        shift = p_ref[2:3, :]
        mask = p_ref[3:4, :]

        y = acc_ref[...] + bias
        # GELU (exact erf form -- matches nn.GELU default)
        y = 0.5 * y * (1.0 + jax.lax.erf(y * 0.7071067811865476))
        # BatchNorm1d (eval), folded: y * gamma/sqrt(var+eps) + (beta - mean*scale)
        y = y * scale + shift
        # Softmax over real classes only (padded columns masked to -1e30)
        y = y + mask
        m = jnp.max(y, axis=-1, keepdims=True)
        e = jnp.exp(y - m)
        denom = jnp.sum(e, axis=-1, keepdims=True)
        o_ref[...] = (e * pl.reciprocal(denom, approx=False)).astype(o_ref.dtype)


def downstream_head(x, w_t, b, gamma, beta, run_mean, run_var, *, eps=1e-5):
    """x: (B, T, D). w_t: (F=T*D, C) pre-transposed Linear weight.

    Returns (B, C) softmax probabilities (float32).
    """
    B, T, D = x.shape
    F = T * D
    C = w_t.shape[1]

    # Flatten(start_dim=1); Dropout(p) in eval mode == identity.
    x_flat = x.reshape(B, F)

    # Fold BatchNorm1d (eval) into per-class scale/shift.
    bn_scale = gamma.astype(jnp.float32) * jax.lax.rsqrt(
        run_var.astype(jnp.float32) + eps)
    bn_shift = beta.astype(jnp.float32) - run_mean.astype(jnp.float32) * bn_scale

    # Pad classes / features to lane-friendly multiples of 128.
    Cp = ((C + 127) // 128) * 128
    Fp = ((F + 127) // 128) * 128

    # Batch tiling: full-array block for small B, 512-row tiles otherwise.
    if B <= 512:
        TB, Bp = B, B
    else:
        TB = 512
        Bp = ((B + TB - 1) // TB) * TB

    # K (feature) tiling: single step for modest F, else 2048-wide slices.
    TK_MAX = 2048
    if Fp <= TK_MAX:
        TK = Fp
    else:
        TK = TK_MAX
        Fp = ((Fp + TK - 1) // TK) * TK

    # Zero-pad operands; padded rows/cols contribute exactly 0 to the matmul.
    x_p = jnp.zeros((Bp, Fp), x_flat.dtype).at[:B, :F].set(x_flat)
    w_p = jnp.zeros((Fp, Cp), w_t.dtype).at[:F, :C].set(w_t)

    # Pack per-class params into one (8, Cp) tile.
    params = jnp.zeros((8, Cp), jnp.float32)
    params = params.at[0, :C].set(b.astype(jnp.float32))          # bias
    params = params.at[1, :C].set(bn_scale)                       # BN scale
    params = params.at[1, C:].set(1.0)
    params = params.at[2, :C].set(bn_shift)                       # BN shift
    params = params.at[3, C:].set(_NEG_BIG)                       # softmax pad mask

    grid = (Bp // TB, Fp // TK)
    out = pl.pallas_call(
        _head_kernel,
        out_shape=jax.ShapeDtypeStruct((Bp, Cp), jnp.float32),
        grid_spec=pltpu.PrefetchScalarGridSpec(
            num_scalar_prefetch=0,
            grid=grid,
            in_specs=[
                pl.BlockSpec((TB, TK), lambda i, k: (i, k)),   # x stream
                pl.BlockSpec((TK, Cp), lambda i, k: (k, 0)),   # weight slice
                pl.BlockSpec((8, Cp), lambda i, k: (0, 0)),    # packed params
            ],
            out_specs=pl.BlockSpec((TB, Cp), lambda i, k: (i, 0)),
            scratch_shapes=[pltpu.VMEM((TB, Cp), jnp.float32)],
        ),
        compiler_params=pltpu.CompilerParams(
            dimension_semantics=("parallel", "arbitrary")),
    )(x_p, w_p, params)

    return out[:B, :C]


def _reference(x, w_t, b, gamma, beta, run_mean, run_var, eps=1e-5):
    B = x.shape[0]
    xf = x.reshape(B, -1).astype(jnp.float32)
    y = xf @ w_t.astype(jnp.float32) + b
    y = 0.5 * y * (1.0 + jax.lax.erf(y / jnp.sqrt(2.0)))
    y = (y - run_mean) / jnp.sqrt(run_var + eps) * gamma + beta
    return jax.nn.softmax(y, axis=-1)


if __name__ == "__main__":
    # Shapes consistent with the module's forward:
    # (Batch, num_token, embedding_token_dim) -> (Batch, num_class=8)
    B, T, D = 2, 8, 32
    num_class = 8
    F = T * D

    key = jax.random.PRNGKey(0)
    kx, kw, kb, kg, kbe, km, kv = jax.random.split(key, 7)

    x = jax.random.normal(kx, (B, T, D), dtype=jnp.float32)

    # nn.Linear init: U(-1/sqrt(F), 1/sqrt(F)); weight stored transposed as (F, C).
    bound = 1.0 / jnp.sqrt(jnp.float32(F))
    w_t = jax.random.uniform(kw, (F, num_class), minval=-bound, maxval=bound,
                             dtype=jnp.float32)
    b = jax.random.uniform(kb, (num_class,), minval=-bound, maxval=bound,
                           dtype=jnp.float32)

    # BatchNorm1d parameters / running stats (deterministic, non-trivial).
    gamma = 1.0 + 0.1 * jax.random.normal(kg, (num_class,), dtype=jnp.float32)
    beta = 0.1 * jax.random.normal(kbe, (num_class,), dtype=jnp.float32)
    run_mean = 0.05 * jax.random.normal(km, (num_class,), dtype=jnp.float32)
    run_var = 1.0 + 0.1 * jax.random.uniform(kv, (num_class,), dtype=jnp.float32)

    out = downstream_head(x, w_t, b, gamma, beta, run_mean, run_var)
    out = jax.block_until_ready(out)

    ref = _reference(x, w_t, b, gamma, beta, run_mean, run_var)
    assert out.shape == (B, num_class)
    assert jnp.allclose(jnp.sum(out, axis=-1), 1.0, atol=1e-5)
    assert jnp.allclose(out, ref, atol=1e-5, rtol=1e-5)

    print("KERNEL_OK")
</pallas_src>

<mosaic_0001>
module attributes {stable_mosaic.version = 11 : i64} {
  func.func @_head_kernel(%arg0: i32, %arg1: i32, %arg2: memref<2x256xf32, #tpu.memory_space<vmem>>, %arg3: memref<256x128xf32, #tpu.memory_space<vmem>>, %arg4: memref<8x128xf32, #tpu.memory_space<vmem>>, %arg5: memref<2x128xf32, #tpu.memory_space<vmem>>, %arg6: memref<2x128xf32, #tpu.memory_space<vmem>>) attributes {dimension_semantics = [#tpu.dimension_semantics<parallel>, #tpu.dimension_semantics<arbitrary>], iteration_bounds = array<i64: 1, 1>, scalar_prefetch = 0 : i64, scratch_operands = 1 : i64, tpu.core_type = #tpu.core_type<tc>, window_params = [{transform_indices = @transform_0, window_bounds = array<i64: 2, 256>}, {transform_indices = @transform_1, window_bounds = array<i64: 256, 128>}, {pipeline_mode = #tpu.pipeline_mode<synchronous>, transform_indices = @transform_2, window_bounds = array<i64: 8, 128>}, {transform_indices = @transform_3, window_bounds = array<i64: 2, 128>}]} {
    %c0_i32 = arith.constant 0 : i32
    %0 = arith.cmpi eq, %arg1, %c0_i32 : i32
    %1 = arith.extui %0 : i1 to i32
    %c0_i32_0 = arith.constant 0 : i32
    %2 = arith.cmpi ne, %1, %c0_i32_0 : i32
    scf.if %2 {
      %cst_10 = arith.constant 0.000000e+00 : f32
      %12 = vector.broadcast %cst_10 : f32 to vector<2x128xf32>
      %c0_11 = arith.constant 0 : index
      %c0_12 = arith.constant 0 : index
      %13 = vector.load %arg6[%c0_11, %c0_12] : memref<2x128xf32, #tpu.memory_space<vmem>>, vector<2x128xf32>
      tpu.vector_store %arg6[%c0_11, %c0_12], %12 {strides = array<i32>} : memref<2x128xf32, #tpu.memory_space<vmem>>, vector<2x128xf32>,
    } else {
    }
    %c0 = arith.constant 0 : index
    %c0_1 = arith.constant 0 : index
    %3 = vector.load %arg6[%c0, %c0_1] : memref<2x128xf32, #tpu.memory_space<vmem>>, vector<2x128xf32>
    %c0_2 = arith.constant 0 : index
    %c0_3 = arith.constant 0 : index
    %4 = vector.load %arg2[%c0_2, %c0_3] : memref<2x256xf32, #tpu.memory_space<vmem>>, vector<2x256xf32>
    %c0_4 = arith.constant 0 : index
    %c0_5 = arith.constant 0 : index
    %5 = vector.load %arg3[%c0_4, %c0_5] : memref<256x128xf32, #tpu.memory_space<vmem>>, vector<256x128xf32>
    %cst = arith.constant dense<0.000000e+00> : vector<2x128xf32>
    %6 = tpu.matmul %4, %5, %cst {dimension_numbers = #tpu.dot_dimension_numbers<[1], [0], [0], [1], [0, 0, 1, 1], [], []>} : vector<2x256xf32>, vector<256x128xf32>, vector<2x128xf32> -> vector<2x128xf32>
    %7 = arith.addf %3, %6 : vector<2x128xf32>
    %c0_6 = arith.constant 0 : index
    %c0_7 = arith.constant 0 : index
    %8 = vector.load %arg6[%c0_6, %c0_7] : memref<2x128xf32, #tpu.memory_space<vmem>>, vector<2x128xf32>
    tpu.vector_store %arg6[%c0_6, %c0_7], %7 {strides = array<i32>} : memref<2x128xf32, #tpu.memory_space<vmem>>, vector<2x128xf32>,
    %c0_i32_8 = arith.constant 0 : i32
    %9 = arith.cmpi eq, %arg1, %c0_i32_8 : i32
    %10 = arith.extui %9 : i1 to i32
    %c0_i32_9 = arith.constant 0 : i32
    %11 = arith.cmpi ne, %10, %c0_i32_9 : i32
    scf.if %11 {
      %c0_10 = arith.constant 0 : index
      %c0_11 = arith.constant 0 : index
      %12 = vector.load %arg4[%c0_10, %c0_11] : memref<8x128xf32, #tpu.memory_space<vmem>>, vector<1x128xf32>
      %c1 = arith.constant 1 : index
      %c0_12 = arith.constant 0 : index
      %13 = vector.load %arg4[%c1, %c0_12] : memref<8x128xf32, #tpu.memory_space<vmem>>, vector<1x128xf32>
      %c2 = arith.constant 2 : index
      %c0_13 = arith.constant 0 : index
      %14 = vector.load %arg4[%c2, %c0_13] : memref<8x128xf32, #tpu.memory_space<vmem>>, vector<1x128xf32>
      %c3 = arith.constant 3 : index
      %c0_14 = arith.constant 0 : index
      %15 = vector.load %arg4[%c3, %c0_14] : memref<8x128xf32, #tpu.memory_space<vmem>>, vector<1x128xf32>
      %c0_15 = arith.constant 0 : index
      %c0_16 = arith.constant 0 : index
      %16 = vector.load %arg6[%c0_15, %c0_16] : memref<2x128xf32, #tpu.memory_space<vmem>>, vector<2x128xf32>
      %17 = vector.broadcast %12 : vector<1x128xf32> to vector<2x128xf32>
      %18 = arith.addf %16, %17 : vector<2x128xf32>
      %cst_17 = arith.constant 5.000000e-01 : f32
      %19 = vector.broadcast %cst_17 : f32 to vector<2x128xf32>
      %20 = arith.mulf %19, %18 : vector<2x128xf32>
      %cst_18 = arith.constant 0.707106769 : f32
      %21 = vector.broadcast %cst_18 : f32 to vector<2x128xf32>
      %22 = arith.mulf %18, %21 : vector<2x128xf32>
      %23 = math.erf %22 : vector<2x128xf32>
      %cst_19 = arith.constant 1.000000e+00 : f32
      %24 = vector.broadcast %cst_19 : f32 to vector<2x128xf32>
      %25 = arith.addf %24, %23 : vector<2x128xf32>
      %26 = arith.mulf %20, %25 : vector<2x128xf32>
      %27 = vector.broadcast %13 : vector<1x128xf32> to vector<2x128xf32>
      %28 = arith.mulf %26, %27 : vector<2x128xf32>
      %29 = vector.broadcast %14 : vector<1x128xf32> to vector<2x128xf32>
      %30 = arith.addf %28, %29 : vector<2x128xf32>
      %31 = vector.broadcast %15 : vector<1x128xf32> to vector<2x128xf32>
      %32 = arith.addf %30, %31 : vector<2x128xf32>
      %cst_20 = arith.constant dense<0xFF800000> : vector<2xf32>
      %33 = vector.multi_reduction <maximumf>, %32, %cst_20 [1] : vector<2x128xf32> to vector<2xf32>
      %34 = vector.shape_cast %33 : vector<2xf32> to vector<2x1xf32>
      %35 = vector.broadcast %34 : vector<2x1xf32> to vector<2x128xf32>
      %36 = arith.subf %32, %35 : vector<2x128xf32>
      %37 = math.exp %36 : vector<2x128xf32>
      %cst_21 = arith.constant dense<0.000000e+00> : vector<2xf32>
      %38 = vector.multi_reduction <add>, %37, %cst_21 [1] : vector<2x128xf32> to vector<2xf32>
      %39 = vector.shape_cast %38 : vector<2xf32> to vector<2x1xf32>
      %40 = tpu.reciprocal %39 : vector<2x1xf32> -> vector<2x1xf32>
      %41 = vector.broadcast %40 : vector<2x1xf32> to vector<2x128xf32>
      %42 = arith.mulf %37, %41 : vector<2x128xf32>
      %c0_22 = arith.constant 0 : index
      %c0_23 = arith.constant 0 : index
      %43 = vector.load %arg5[%c0_22, %c0_23] : memref<2x128xf32, #tpu.memory_space<vmem>>, vector<2x128xf32>
      tpu.vector_store %arg5[%c0_22, %c0_23], %42 {strides = array<i32>} : memref<2x128xf32, #tpu.memory_space<vmem>>, vector<2x128xf32>,
    } else {
    }
    return
  }
  func.func @transform_0(%arg0: i32, %arg1: i32) -> (i32, i32) {
    %c0_i32 = arith.constant 0 : i32
    return %arg0, %arg1 : i32, i32
  }
  func.func @transform_1(%arg0: i32, %arg1: i32) -> (i32, i32) {
    %c0_i32 = arith.constant 0 : i32
    %c0_i32_0 = arith.constant 0 : i32
    return %arg1, %c0_i32 : i32, i32
  }
  func.func @transform_2(%arg0: i32, %arg1: i32) -> (i32, i32) {
    %c0_i32 = arith.constant 0 : i32
    %c0_i32_0 = arith.constant 0 : i32
    %c0_i32_1 = arith.constant 0 : i32
    return %c0_i32, %c0_i32_0 : i32, i32
  }
  func.func @transform_3(%arg0: i32, %arg1: i32) -> (i32, i32) {
    %c0_i32 = arith.constant 0 : i32
    %c0_i32_0 = arith.constant 0 : i32
    return %arg0, %c0_i32 : i32, i32
  }
}

</mosaic_0001>

<llo_original>
// kernel: tpu_custom_call.1
$region0: #{tpu_custom_call.1}
  #allocation0 [shape = 'u32[]', space=smem, size = 0x4, offset = 0x4, fixed_abs, tag = 'smem constant byte address 0x4 - core index']
  #allocation1 [shape = 'u32[144,128]{1,0:T(1,128)}', space=vmem, size = 0x12000, scoped, tag = 'internal scratch']
  #allocation2 [shape = 'f32[2,128]{1,0:T(2,128)}', space=vmem, size = 0x400, scoped, tag = 'scratch operand']
  %s0 = inlined_call_operand.hbm [shape: f32[2,256], index: 0, kind: input, shape index: {}]
  %s1 = inlined_call_operand.hbm [shape: f32[256,128], index: 1, kind: input, shape index: {}]
  %s2 = inlined_call_operand.hbm [shape: f32[8,128], index: 2, kind: input, shape index: {}]
  %s3 = inlined_call_operand.hbm [shape: f32[2,128], index: 3, kind: output, shape index: {}]
  %s4 = sld [smem:[#allocation0]]
  $region42: #{tpu_custom_call.1} parent=0
    _
  %s6 = ssub.s32 1, %s4
  %s7 = scalar_select 0, %s6, %s4
  $region1: #{tpu_custom_call.1} parent=0
    #allocation3 [shape = 'u8[2048]{0}', space=vmem, size = 0x800, scoped, tag = 'input window, operand 0, single buffered']
    #allocation4 [shape = 's32[1]{0}', space=sflag, size = 0x4, scoped, tag = 'scoped memory for tpu_custom_call.1']
    #allocation5 [shape = 's32[1]{0}', space=sflag, size = 0x4, scoped, tag = 'scoped memory for tpu_custom_call.1']
    #allocation6 [shape = 'u8[131072]{0}', space=vmem, size = 0x20000, scoped, tag = 'input window, operand 1, single buffered']
    #allocation7 [shape = 's32[1]{0}', space=sflag, size = 0x4, scoped, tag = 'scoped memory for tpu_custom_call.1']
    #allocation8 [shape = 'u8[4096]{0}', space=vmem, size = 0x1000, scoped, tag = 'input window, operand 2, single buffered']
    #allocation9 [shape = 'u8[1024]{0}', space=vmem, size = 0x400, scoped, tag = 'output window, operand 0, single buffered']
    %8 = vsyncpa [#allocation4], 0
    %9 = vsyncpa [#allocation7], 0
    %10 = vsyncpa [#allocation5], 0
    // Predicated region
    $region2: #{tpu_custom_call.1} parent=1 // pred_check
      _
    $region3: #{tpu_custom_call.1} parent=1 // pred_check_branch
      %12 = sbr.rel (0) target = $region5
    $region4: #{tpu_custom_call.1} parent=1 // pred_region
      %s14 = ssub.s32 64, 64
      %15 = vsyncadd [#allocation4], %s14
      %s17 = sshll.u32 [#allocation3], 4
      %s18 = int_to_ptr.vmem [resolvable:$true] %s17
      %20 = dma.hbm_to_vmem [thread:$0]  %s0, 64, %s18, [#allocation4]
    $region5: #{tpu_custom_call.1} parent=1 // pred_fallthru
      _
    // Predicated region
    $region6: #{tpu_custom_call.1} parent=1 // pred_check
      _
    $region7: #{tpu_custom_call.1} parent=1 // pred_check_branch
      %22 = sbr.rel (0) target = $region9
    $region8: #{tpu_custom_call.1} parent=1 // pred_region
      %s24 = ssub.s32 4096, 4096
      %25 = vsyncadd [#allocation7], %s24
      %s26 = sshll.u32 [#allocation6], 4
      %s27 = int_to_ptr.vmem [resolvable:$true] %s26
      %32 = dma.hbm_to_vmem [thread:$0]  %s1, 4096, %s27, [#allocation7], 128, 128, 8
    $region9: #{tpu_custom_call.1} parent=1 // pred_fallthru
      _
    // Predicated region
    $region10: #{tpu_custom_call.1} parent=1 // pred_check
      _
    $region11: #{tpu_custom_call.1} parent=1 // pred_check_branch
      %34 = sbr.rel (0) target = $region13
    $region12: #{tpu_custom_call.1} parent=1 // pred_region
      %s36 = ssub.s32 128, 128
      %37 = vsyncadd [#allocation7], %s36
      %s39 = sshll.u32 [#allocation8], 4
      %s40 = int_to_ptr.vmem [resolvable:$true] %s39
      %42 = dma.hbm_to_vmem [thread:$0]  %s2, 128, %s40, [#allocation7]
    $region13: #{tpu_custom_call.1} parent=1 // pred_fallthru
      _
    // Predicated region
    $region14: #{tpu_custom_call.1} parent=1 // pred_check
      _
    $region15: #{tpu_custom_call.1} parent=1 // pred_check_branch
      %44 = sbr.rel (0) target = $region17
    $region16: #{tpu_custom_call.1} parent=1 // pred_region
      %45 = dma.done [#allocation4], 64
    $region17: #{tpu_custom_call.1} parent=1 // pred_fallthru
      _
    // Predicated region
    $region18: #{tpu_custom_call.1} parent=1 // pred_check
      _
    $region19: #{tpu_custom_call.1} parent=1 // pred_check_branch
      %47 = sbr.rel (0) target = $region21
    $region20: #{tpu_custom_call.1} parent=1 // pred_region
      %48 = dma.done [#allocation7], 4096
    $region21: #{tpu_custom_call.1} parent=1 // pred_fallthru
      _
    // Predicated region
    $region22: #{tpu_custom_call.1} parent=1 // pred_check
      _
    $region23: #{tpu_custom_call.1} parent=1 // pred_check_branch
      %50 = sbr.rel (0) target = $region25
    $region24: #{tpu_custom_call.1} parent=1 // pred_region
      %51 = dma.done [#allocation7], 128
    $region25: #{tpu_custom_call.1} parent=1 // pred_fallthru
      _
    %p52 = scmp.eq.s32.totalorder 0, 0
    // Predicated region
    $region26: #{tpu_custom_call.1} parent=1 // pred_check
      %p53 = pneg %p52
    $region27: #{tpu_custom_call.1} parent=1 // pred_check_branch
      %55 = sbr.rel (%p53) target = $region29
    $region28: #{tpu_custom_call.1} parent=1 // pred_region
      %56 = vst [vmem:[#allocation2] sm:$0x3] 0.0
    $region29: #{tpu_custom_call.1} parent=1 // pred_fallthru
      _
    %v57 = vld [vmem:[#allocation2] sm:$0x3]
    %v58 = vld [vmem:[#allocation3] sm:$0xf]
    %v59 = vld [vmem:[#allocation6] sm:$0xff]
    %v60 = vld [vmem:[#allocation6 + $0x8] sm:$0xff]
    %v61 = vld [vmem:[#allocation6 + $0x10] sm:$0xff]
    %v62 = vld [vmem:[#allocation6 + $0x18] sm:$0xff]
    %v63 = vld [vmem:[#allocation6 + $0x20] sm:$0xff]
    %v64 = vld [vmem:[#allocation6 + $0x28] sm:$0xff]
    %v65 = vld [vmem:[#allocation6 + $0x30] sm:$0xff]
    %v66 = vld [vmem:[#allocation6 + $0x38] sm:$0xff]
    %v67 = vld [vmem:[#allocation6 + $0x40] sm:$0xff]
    %v68 = vld [vmem:[#allocation6 + $0x48] sm:$0xff]
    %v69 = vld [vmem:[#allocation6 + $0x50] sm:$0xff]
    %v70 = vld [vmem:[#allocation6 + $0x58] sm:$0xff]
    %v71 = vld [vmem:[#allocation6 + $0x60] sm:$0xff]
    %v72 = vld [vmem:[#allocation6 + $0x68] sm:$0xff]
    %v73 = vld [vmem:[#allocation6 + $0x70] sm:$0xff]
    %v74 = vld [vmem:[#allocation6 + $0x78] sm:$0xff]
    %v75 = vld [vmem:[#allocation6 + $0x80] sm:$0xff]
    %v76 = vld [vmem:[#allocation6 + $0x88] sm:$0xff]
    %v77 = vld [vmem:[#allocation6 + $0x90] sm:$0xff]
    %v78 = vld [vmem:[#allocation6 + $0x98] sm:$0xff]
    %v79 = vld [vmem:[#allocation6 + $0xa0] sm:$0xff]
    %v80 = vld [vmem:[#allocation6 + $0xa8] sm:$0xff]
    %v81 = vld [vmem:[#allocation6 + $0xb0] sm:$0xff]
    %v82 = vld [vmem:[#allocation6 + $0xb8] sm:$0xff]
    %v83 = vld [vmem:[#allocation6 + $0xc0] sm:$0xff]
    %v84 = vld [vmem:[#allocation6 + $0xc8] sm:$0xff]
    %v85 = vld [vmem:[#allocation6 + $0xd0] sm:$0xff]
    %v86 = vld [vmem:[#allocation6 + $0xd8] sm:$0xff]
    %v87 = vld [vmem:[#allocation6 + $0xe0] sm:$0xff]
    %v88 = vld [vmem:[#allocation6 + $0xe8] sm:$0xff]
    %v89 = vld [vmem:[#allocation6 + $0xf0] sm:$0xff]
    %v90 = vld [vmem:[#allocation6 + $0xf8] sm:$0xff]
    %v93 = vunpack.c.l.s4 1983009808
    %v94 = vunpack.c.0.s8 %v93
    %v95 = vlaneseq
    %v96 = vshrl.u32 %v95, 7
    %v97 = vsub.s32 %v94, %v96
    %v98 = vrot.slane %v58, %v97
    %v99 = vcombine.high %v98, %v98
    %102 = vmatprep.subr.mxu0 0.0
    %103 = vmatpush1.msra.mxu0 %v74
    %104 = vmatprep.subr.mxu0 0.0
    %105 = vmatpush1.msra.mxu0 %v73
    %106 = vmatprep.subr.mxu0 0.0
    %107 = vmatpush1.msra.mxu0 %v72
    %108 = vmatprep.subr.mxu0 0.0
    %109 = vmatpush1.msra.mxu0 %v71
    %110 = vmatprep.subr.mxu0 0.0
    %111 = vmatpush1.msra.mxu0 %v70
    %112 = vmatprep.subr.mxu0 0.0
    %113 = vmatpush1.msra.mxu0 %v69
    %114 = vmatprep.subr.mxu0 0.0
    %115 = vmatpush1.msra.mxu0 %v68
    %116 = vmatprep.subr.mxu0 0.0
    %117 = vmatpush1.msra.mxu0 %v67
    %118 = vmatprep.subr.mxu0 0.0
    %119 = vmatpush1.msra.mxu0 %v66
    %120 = vmatprep.subr.mxu0 0.0
    %121 = vmatpush1.msra.mxu0 %v65
    %122 = vmatprep.subr.mxu0 0.0
    %123 = vmatpush1.msra.mxu0 %v64
    %124 = vmatprep.subr.mxu0 0.0
    %125 = vmatpush1.msra.mxu0 %v63
    %126 = vmatprep.subr.mxu0 0.0
    %127 = vmatpush1.msra.mxu0 %v62
    %128 = vmatprep.subr.mxu0 0.0
    %129 = vmatpush1.msra.mxu0 %v61
    %130 = vmatprep.subr.mxu0 0.0
    %131 = vmatpush1.msra.mxu0 %v60
    %132 = vmatprep.subr.mxu0 0.0
    %133 = vmatpush1.msra.mxu0 %v59
    %134 = vmatprep.subr.mxu0 0.0
    %135 = vmatpush2.msra.mxu0 %v90
    %136 = vmatprep.subr.mxu0 0.0
    %137 = vmatpush2.msra.mxu0 %v89
    %138 = vmatprep.subr.mxu0 0.0
    %139 = vmatpush2.msra.mxu0 %v88
    %140 = vmatprep.subr.mxu0 0.0
    %141 = vmatpush2.msra.mxu0 %v87
    %142 = vmatprep.subr.mxu0 0.0
    %143 = vmatpush2.msra.mxu0 %v86
    %144 = vmatprep.subr.mxu0 0.0
    %145 = vmatpush2.msra.mxu0 %v85
    %146 = vmatprep.subr.mxu0 0.0
    %147 = vmatpush2.msra.mxu0 %v84
    %148 = vmatprep.subr.mxu0 0.0
    %149 = vmatpush2.msra.mxu0 %v83
    %150 = vmatprep.subr.mxu0 0.0
    %151 = vmatpush2.msra.mxu0 %v82
    %152 = vmatprep.subr.mxu0 0.0
    %153 = vmatpush2.msra.mxu0 %v81
    %154 = vmatprep.subr.mxu0 0.0
    %155 = vmatpush2.msra.mxu0 %v80
    %156 = vmatprep.subr.mxu0 0.0
    %157 = vmatpush2.msra.mxu0 %v79
    %158 = vmatprep.subr.mxu0 0.0
    %159 = vmatpush2.msra.mxu0 %v78
    %160 = vmatprep.subr.mxu0 0.0
    %161 = vmatpush2.msra.mxu0 %v77
    %162 = vmatprep.subr.mxu0 0.0
    %163 = vmatpush2.msra.mxu0 %v76
    %164 = vmatprep.subr.mxu0 0.0
    %165 = vmatpush2.msra.mxu0 %v75
    %166 = vmatprep.mubr.f32.mxu0 %v99
    %167 = vmatmul.mubr.f32.gmra.mxu0 %v98
    %v168 = vpop.f32.mrf.mxu0
    %v169 = vadd.f32 0.0, %v168
    %v170 = vpop.f32.mrf.mxu0
    %171 = vdwg.mxu0
    %v172 = vadd.f32 %v57, %v169
    %173 = vst [vmem:[#allocation2] sm:$0x3] %v172
    // Predicated region
    $region30: #{tpu_custom_call.1} parent=1 // pred_check
      %p174 = pneg %p52
    $region31: #{tpu_custom_call.1} parent=1 // pred_check_branch
      %176 = sbr.rel (%p174) target = $region33
    $region32: #{tpu_custom_call.1} parent=1 // pred_region
      %v177 = vld [vmem:[#allocation8] sm:$0x1]
      %v178 = vld [vmem:[#allocation8 + $0x1] sm:$0x1]
      %v179 = vld [vmem:[#allocation8 + $0x2] sm:$0x1]
      %v180 = vld [vmem:[#allocation8 + $0x3] sm:$0x1]
      %v181 = vld [vmem:[#allocation2] sm:$0x3]
      %v182 = vlaneseq
      %v183 = vshrl.u32 %v182, 7
      %v184 = vsub.s32 0, %v183
      %v185 = vrot.slane %v177, %v184
      %v186 = vadd.f32 %v181, %v185
      %v187 = vmul.f32 %v186, 0.5
      %v188 = vmul.f32 %v186, 0.70710677
      %v189 = verf.f32.pop %v188
      %v190 = vadd.f32 %v189, 1.0
      %v191 = vmul.f32 %v187, %v190
      %v192 = vlaneseq
      %v193 = vshrl.u32 %v192, 7
      %v194 = vsub.s32 0, %v193
      %v195 = vrot.slane %v178, %v194
      %v196 = vmul.f32 %v191, %v195
      %v197 = vlaneseq
      %v198 = vshrl.u32 %v197, 7
      %v199 = vsub.s32 0, %v198
      %v200 = vrot.slane %v179, %v199
      %v201 = vadd.f32 %v196, %v200
      %v202 = vlaneseq
      %v203 = vshrl.u32 %v202, 7
      %v204 = vsub.s32 0, %v203
      %v205 = vrot.slane %v180, %v204
      %v206 = vadd.f32 %v201, %v205
      %vm207 = vcmask 1041408
      %v208 = vsel %vm207, %v206, -inf
      %209 = vmax.xlane.f32.xlu0 %v208
      %v210 = vpop.xlane.xlu0 %209
      %v211 = vsub.f32 %v206, %v210
      %v212 = vmul.f32 %v211, 1.442695
      %v213 = vpow.pop %v212
      %v214 = vsel %vm207, %v213, 0.0
      %215 = vadd.xlane.f32.xlu0 %v214
      %v216 = vpop.xlane.xlu0 %215
      %v217 = vrcp.pop %v216
      %v218 = vmul.f32 %v213, %v217
      %219 = vst [vmem:[#allocation9] sm:$0x3] %v218
    $region33: #{tpu_custom_call.1} parent=1 // pred_fallthru
      _
    // Predicated region
    $region34: #{tpu_custom_call.1} parent=1 // pred_check
      _
    $region35: #{tpu_custom_call.1} parent=1 // pred_check_branch
      %221 = sbr.rel (0) target = $region37
    $region36: #{tpu_custom_call.1} parent=1 // pred_region
      %s223 = ssub.s32 32, 32
      %224 = vsyncadd [#allocation5], %s223
      %s226 = sshll.u32 [#allocation9], 4
      %s227 = int_to_ptr.vmem [resolvable:$true] %s226
      %229 = dma.vmem_to_hbm [thread:$0]  %s227, 32, %s3, [#allocation5]
    $region37: #{tpu_custom_call.1} parent=1 // pred_fallthru
      _
    // Predicated region
    $region38: #{tpu_custom_call.1} parent=1 // pred_check
      _
    $region39: #{tpu_custom_call.1} parent=1 // pred_check_branch
      %231 = sbr.rel (0) target = $region41
    $region40: #{tpu_custom_call.1} parent=1 // pred_region
      %232 = dma.done [#allocation5], 32
    $region41: #{tpu_custom_call.1} parent=1 // pred_fallthru
      _
    %233 = vsyncpa [#allocation4], 1
    %234 = vsyncpa [#allocation7], 1
    %235 = vsyncpa [#allocation5], 1

</llo_original>
